<compile_context>
chip_gen: v7x
topology: tpu7x:2x2x1
jax: 0.10.0
libtpu: 0.0.40
codegen_flags: <defaults>
</compile_context>

<pallas_src>
import functools

import jax
import jax.numpy as jnp
from jax.experimental import pallas as pl
from jax.experimental.pallas import tpu as pltpu


def _round_up(x, m):
    return (x + m - 1) // m * m


def _trans_output_kernel(x_ref, w1_ref, b_ref, w2_ref, b2_ref, o_ref):
    # x_ref:  (TN, D)      node-feature tile (f32 or bf16)
    # w1_ref: (D, H)       first linear weight with BN scale folded in
    # b_ref:  (1, H)       folded BN shift (f32)
    # w2_ref: (H, Cp)      second linear weight, lane-padded to Cp (mult of 128)
    # b2_ref: (1, Cp)      second linear bias, lane-padded (f32)
    # o_ref:  (TN, Cp)     logits tile (lane-dense)
    h = jnp.dot(x_ref[...], w1_ref[...], preferred_element_type=jnp.float32)
    h = h + b_ref[...]                       # folded eval-mode BatchNorm shift
    h = jnp.where(h >= 0.0, h, 0.2 * h)      # LeakyReLU(0.2)  (f32 elementwise)
    # Dropout: identity in eval mode.
    out = jnp.dot(h.astype(w2_ref.dtype), w2_ref[...],
                  preferred_element_type=jnp.float32) + b2_ref[...]
    o_ref[...] = out.astype(o_ref.dtype)


@functools.partial(jax.jit, static_argnames=("tile_n", "use_bf16"))
def trans_output(V, w1, gamma, beta, run_mean, run_var, w2, b2, *,
                 tile_n=256, use_bf16=False):
    N, D = V.shape
    H = w1.shape[1]
    C = w2.shape[1]
    eps = 1e-5
    out_dtype = V.dtype

    # ---- glue (plain JAX): fold eval-mode BN into W1 + additive shift ----------
    scale = gamma * jax.lax.rsqrt(run_var + eps)          # (H,)
    shift = (beta - run_mean * scale).reshape(1, H)       # (1, H)  f32
    w1_folded = w1 * scale[None, :]                       # (D, H)

    # ---- lane-dense output: pad class dim to a multiple of 128 -----------------
    C_pad = _round_up(C, 128)
    w2_p = jnp.pad(w2, ((0, 0), (0, C_pad - C)))
    b2_p = jnp.pad(b2, (0, C_pad - C)).reshape(1, C_pad).astype(jnp.float32)

    # ---- row tiling with tail handling (pad N up to a multiple of the tile) ----
    align = 16 if use_bf16 else 8
    tn = min(_round_up(tile_n, align), _round_up(N, align))
    N_pad = _round_up(N, tn)
    V_p = jnp.pad(V, ((0, N_pad - N), (0, 0))) if N_pad != N else V

    compute_dtype = jnp.bfloat16 if use_bf16 else out_dtype
    V_p = V_p.astype(compute_dtype)
    w1_folded = w1_folded.astype(compute_dtype)
    w2_p = w2_p.astype(compute_dtype)

    grid = (N_pad // tn,)

    # ---- VMEM budget: double-buffered V/out tiles + resident weights -----------
    isz = jnp.dtype(compute_dtype).itemsize
    vmem_bytes = (2 * tn * D * isz            # V tile (double-buffered)
                  + 2 * D * H * isz           # W1
                  + 2 * H * C_pad * isz       # W2
                  + 2 * (H + C_pad) * 4       # shift, b2
                  + 2 * tn * C_pad * 4)       # output tile (double-buffered)
    vmem_limit = int(min(int(vmem_bytes * 1.5) + (4 << 20), 100 << 20))

    cost = pl.CostEstimate(
        flops=2 * N_pad * D * H + 2 * N_pad * H * C_pad,
        transcendentals=0,
        bytes_accessed=(N_pad * D * isz + D * H * isz + H * C_pad * isz
                        + N_pad * C_pad * 4),
    )

    out = pl.pallas_call(
        _trans_output_kernel,
        out_shape=jax.ShapeDtypeStruct((N_pad, C_pad), out_dtype),
        grid_spec=pltpu.PrefetchScalarGridSpec(
            num_scalar_prefetch=0,
            grid=grid,
            in_specs=[
                pl.BlockSpec((tn, D), lambda i: (i, 0)),       # V row tile
                pl.BlockSpec((D, H), lambda i: (0, 0)),        # W1 (BN-folded)
                pl.BlockSpec((1, H), lambda i: (0, 0)),        # BN shift
                pl.BlockSpec((H, C_pad), lambda i: (0, 0)),    # W2 (lane-padded)
                pl.BlockSpec((1, C_pad), lambda i: (0, 0)),    # b2 (lane-padded)
            ],
            out_specs=pl.BlockSpec((tn, C_pad), lambda i: (i, 0)),
        ),
        compiler_params=pltpu.CompilerParams(
            dimension_semantics=("parallel",),
            vmem_limit_bytes=vmem_limit,
        ),
        cost_estimate=cost,
    )(V_p, w1_folded, shift, w2_p, b2_p)

    return out[:N, :C]


def reference(V, w1, gamma, beta, run_mean, run_var, w2, b2):
    eps = 1e-5
    h = V @ w1
    h = (h - run_mean) / jnp.sqrt(run_var + eps) * gamma + beta
    h = jnp.where(h >= 0.0, h, 0.2 * h)
    return h @ w2 + b2


if __name__ == "__main__":
    # Small shapes consistent with the module: N nodes, D = inter_channel_V,
    # H = D // 2, C = nb_classes.  N=20 deliberately exercises tail-row padding.
    D, C = 32, 8
    H = D // 2

    key = jax.random.PRNGKey(0)
    kV, k1, k2, k3, kg, kb, km, kv = jax.random.split(key, 8)

    w1 = jax.random.normal(k1, (D, H), dtype=jnp.float32) * 0.1   # Linear(D, H, bias=False)
    gamma = jax.random.normal(kg, (H,), dtype=jnp.float32) * 0.1 + 1.0
    beta = jax.random.normal(kb, (H,), dtype=jnp.float32) * 0.1
    run_mean = jax.random.normal(km, (H,), dtype=jnp.float32) * 0.1
    run_var = jax.random.uniform(kv, (H,), dtype=jnp.float32, minval=0.5, maxval=1.5)
    w2 = jax.random.normal(k2, (H, C), dtype=jnp.float32) * 0.1   # Linear(H, C)
    b2 = jax.random.normal(k3, (C,), dtype=jnp.float32) * 0.1

    # Case 1: small N with a ragged tail (N=20), f32 operands.
    N1 = 20
    V1 = jax.random.normal(kV, (N1, D), dtype=jnp.float32)
    out1 = jax.block_until_ready(
        trans_output(V1, w1, gamma, beta, run_mean, run_var, w2, b2))
    ref1 = reference(V1, w1, gamma, beta, run_mean, run_var, w2, b2)
    assert out1.shape == (N1, C)
    assert jnp.allclose(out1, ref1, atol=1e-4, rtol=1e-4), "f32 mismatch (case 1)"

    # Case 2: multi-tile grid with padding (N=300, tile_n=128), f32 operands.
    N2 = 300
    V2 = jax.random.normal(jax.random.PRNGKey(1), (N2, D), dtype=jnp.float32)
    out2 = jax.block_until_ready(
        trans_output(V2, w1, gamma, beta, run_mean, run_var, w2, b2, tile_n=128))
    ref2 = reference(V2, w1, gamma, beta, run_mean, run_var, w2, b2)
    assert out2.shape == (N2, C)
    assert jnp.allclose(out2, ref2, atol=1e-4, rtol=1e-4), "f32 mismatch (case 2)"

    # Case 3: bf16 operand path (halved HBM traffic, MXU bf16), looser tolerance.
    out3 = jax.block_until_ready(
        trans_output(V2, w1, gamma, beta, run_mean, run_var, w2, b2,
                     tile_n=128, use_bf16=True))
    assert out3.shape == (N2, C)
    assert jnp.allclose(out3, ref2, atol=5e-2, rtol=5e-2), "bf16 mismatch (case 3)"

    print("KERNEL_OK")
</pallas_src>

<mosaic_0001>
module attributes {stable_mosaic.version = 11 : i64} {
  func.func @_trans_output_kernel(%arg0: i32, %arg1: memref<24x32xf32, #tpu.memory_space<vmem>>, %arg2: memref<32x16xf32, #tpu.memory_space<vmem>>, %arg3: memref<1x16xf32, #tpu.memory_space<vmem>>, %arg4: memref<16x128xf32, #tpu.memory_space<vmem>>, %arg5: memref<1x128xf32, #tpu.memory_space<vmem>>, %arg6: memref<24x128xf32, #tpu.memory_space<vmem>>) attributes {dimension_semantics = [#tpu.dimension_semantics<parallel>], iteration_bounds = array<i64: 1>, scalar_prefetch = 0 : i64, scratch_operands = 0 : i64, tpu.core_type = #tpu.core_type<tc>, window_params = [{transform_indices = @transform_0, window_bounds = array<i64: 24, 32>}, {pipeline_mode = #tpu.pipeline_mode<synchronous>, transform_indices = @transform_1, window_bounds = array<i64: 32, 16>}, {pipeline_mode = #tpu.pipeline_mode<synchronous>, transform_indices = @transform_2, window_bounds = array<i64: 1, 16>}, {pipeline_mode = #tpu.pipeline_mode<synchronous>, transform_indices = @transform_3, window_bounds = array<i64: 16, 128>}, {pipeline_mode = #tpu.pipeline_mode<synchronous>, transform_indices = @transform_4, window_bounds = array<i64: 1, 128>}, {transform_indices = @transform_5, window_bounds = array<i64: 24, 128>}]} {
    %c0 = arith.constant 0 : index
    %c0_0 = arith.constant 0 : index
    %0 = vector.load %arg1[%c0, %c0_0] : memref<24x32xf32, #tpu.memory_space<vmem>>, vector<24x32xf32>
    %c0_1 = arith.constant 0 : index
    %c0_2 = arith.constant 0 : index
    %1 = vector.load %arg2[%c0_1, %c0_2] : memref<32x16xf32, #tpu.memory_space<vmem>>, vector<32x16xf32>
    %cst = arith.constant dense<0.000000e+00> : vector<24x16xf32>
    %2 = tpu.matmul %0, %1, %cst {dimension_numbers = #tpu.dot_dimension_numbers<[1], [0], [0], [1], [0, 0, 1, 1], [], []>} : vector<24x32xf32>, vector<32x16xf32>, vector<24x16xf32> -> vector<24x16xf32>
    %c0_3 = arith.constant 0 : index
    %c0_4 = arith.constant 0 : index
    %3 = vector.load %arg3[%c0_3, %c0_4] : memref<1x16xf32, #tpu.memory_space<vmem>>, vector<1x16xf32>
    %4 = vector.broadcast %3 : vector<1x16xf32> to vector<24x16xf32>
    %5 = arith.addf %2, %4 : vector<24x16xf32>
    %cst_5 = arith.constant 0.000000e+00 : f32
    %6 = vector.broadcast %cst_5 : f32 to vector<24x16xf32>
    %7 = arith.cmpf oge, %5, %6 : vector<24x16xf32>
    %cst_6 = arith.constant 2.000000e-01 : f32
    %8 = vector.broadcast %cst_6 : f32 to vector<24x16xf32>
    %9 = arith.mulf %8, %5 : vector<24x16xf32>
    %10 = arith.select %7, %5, %9 : vector<24x16xi1>, vector<24x16xf32>
    %c0_7 = arith.constant 0 : index
    %c0_8 = arith.constant 0 : index
    %11 = vector.load %arg4[%c0_7, %c0_8] : memref<16x128xf32, #tpu.memory_space<vmem>>, vector<16x128xf32>
    %cst_9 = arith.constant dense<0.000000e+00> : vector<24x128xf32>
    %12 = tpu.matmul %10, %11, %cst_9 {dimension_numbers = #tpu.dot_dimension_numbers<[1], [0], [0], [1], [0, 0, 1, 1], [], []>} : vector<24x16xf32>, vector<16x128xf32>, vector<24x128xf32> -> vector<24x128xf32>
    %c0_10 = arith.constant 0 : index
    %c0_11 = arith.constant 0 : index
    %13 = vector.load %arg5[%c0_10, %c0_11] : memref<1x128xf32, #tpu.memory_space<vmem>>, vector<1x128xf32>
    %14 = vector.broadcast %13 : vector<1x128xf32> to vector<24x128xf32>
    %15 = arith.addf %12, %14 : vector<24x128xf32>
    %c0_12 = arith.constant 0 : index
    %c0_13 = arith.constant 0 : index
    %16 = vector.load %arg6[%c0_12, %c0_13] : memref<24x128xf32, #tpu.memory_space<vmem>>, vector<24x128xf32>
    tpu.vector_store %arg6[%c0_12, %c0_13], %15 {strides = array<i32>} : memref<24x128xf32, #tpu.memory_space<vmem>>, vector<24x128xf32>,
    return
  }
  func.func @transform_0(%arg0: i32) -> (i32, i32) {
    %c0_i32 = arith.constant 0 : i32
    %c0_i32_0 = arith.constant 0 : i32
    return %arg0, %c0_i32 : i32, i32
  }
  func.func @transform_1(%arg0: i32) -> (i32, i32) {
    %c0_i32 = arith.constant 0 : i32
    %c0_i32_0 = arith.constant 0 : i32
    %c0_i32_1 = arith.constant 0 : i32
    return %c0_i32, %c0_i32_0 : i32, i32
  }
  func.func @transform_2(%arg0: i32) -> (i32, i32) {
    %c0_i32 = arith.constant 0 : i32
    %c0_i32_0 = arith.constant 0 : i32
    %c0_i32_1 = arith.constant 0 : i32
    return %c0_i32, %c0_i32_0 : i32, i32
  }
  func.func @transform_3(%arg0: i32) -> (i32, i32) {
    %c0_i32 = arith.constant 0 : i32
    %c0_i32_0 = arith.constant 0 : i32
    %c0_i32_1 = arith.constant 0 : i32
    return %c0_i32, %c0_i32_0 : i32, i32
  }
  func.func @transform_4(%arg0: i32) -> (i32, i32) {
    %c0_i32 = arith.constant 0 : i32
    %c0_i32_0 = arith.constant 0 : i32
    %c0_i32_1 = arith.constant 0 : i32
    return %c0_i32, %c0_i32_0 : i32, i32
  }
  func.func @transform_5(%arg0: i32) -> (i32, i32) {
    %c0_i32 = arith.constant 0 : i32
    %c0_i32_0 = arith.constant 0 : i32
    return %arg0, %c0_i32 : i32, i32
  }
}

</mosaic_0001>

<llo_original>
// kernel: trans_output.1
$region0: #{trans_output.1}
  #allocation0 [shape = 'u32[]', space=smem, size = 0x4, offset = 0x4, fixed_abs, tag = 'smem constant byte address 0x4 - core index']
  #allocation1 [shape = 'u32[144,128]{1,0:T(1,128)}', space=vmem, size = 0x12000, scoped, tag = 'internal scratch']
  %s0 = inlined_call_operand.vmem [shape: f32[24,32], index: 0, kind: input, shape index: {}]
  %s1 = inlined_call_operand.vmem [shape: f32[32,16], index: 1, kind: input, shape index: {}]
  %s2 = inlined_call_operand.vmem [shape: f32[1,16], index: 2, kind: input, shape index: {}]
  %s3 = inlined_call_operand.vmem [shape: f32[16,128], index: 3, kind: input, shape index: {}]
  %s4 = inlined_call_operand.vmem [shape: f32[1,128], index: 4, kind: input, shape index: {}]
  %s5 = inlined_call_operand.vmem [shape: f32[24,128], index: 5, kind: output, shape index: {}]
  %s6 = sld [smem:[#allocation0]]
  $region30: #{trans_output.1} parent=0
    _
  %s8 = ssub.s32 1, %s6
  %s9 = scalar_select 0, %s8, %s6
  // Predicated region
  $region2: #{trans_output.1} parent=0 // pred_check
    _
  $region3: #{trans_output.1} parent=0 // pred_check_branch
    %11 = sbr.rel (0) target = $region5
  $region4: #{trans_output.1} parent=0 // pred_region
    _
  $region5: #{trans_output.1} parent=0 // pred_fallthru
    _
  // Predicated region
  $region6: #{trans_output.1} parent=0 // pred_check
    _
  $region7: #{trans_output.1} parent=0 // pred_check_branch
    %13 = sbr.rel (0) target = $region9
  $region8: #{trans_output.1} parent=0 // pred_region
    _
  $region9: #{trans_output.1} parent=0 // pred_fallthru
    _
  // Predicated region
  $region10: #{trans_output.1} parent=0 // pred_check
    _
  $region11: #{trans_output.1} parent=0 // pred_check_branch
    %15 = sbr.rel (0) target = $region13
  $region12: #{trans_output.1} parent=0 // pred_region
    _
  $region13: #{trans_output.1} parent=0 // pred_fallthru
    _
  // Predicated region
  $region14: #{trans_output.1} parent=0 // pred_check
    _
  $region15: #{trans_output.1} parent=0 // pred_check_branch
    %17 = sbr.rel (0) target = $region17
  $region16: #{trans_output.1} parent=0 // pred_region
    _
  $region17: #{trans_output.1} parent=0 // pred_fallthru
    _
  // Predicated region
  $region18: #{trans_output.1} parent=0 // pred_check
    _
  $region19: #{trans_output.1} parent=0 // pred_check_branch
    %19 = sbr.rel (0) target = $region21
  $region20: #{trans_output.1} parent=0 // pred_region
    _
  $region21: #{trans_output.1} parent=0 // pred_fallthru
    _
  %v20 = vld [vmem:[%s0] sm:$0xff]
  %v21 = vld [vmem:[%s0 + $0x8] sm:$0xff]
  %v22 = vld [vmem:[%s0 + $0x10] sm:$0xff]
  %v23 = vld [vmem:[%s1] sm:$0xff]
  %v24 = vld [vmem:[%s1 + $0x8] sm:$0xff]
  %v25 = vld [vmem:[%s1 + $0x10] sm:$0xff]
  %v26 = vld [vmem:[%s1 + $0x18] sm:$0xff]
  %v27 = vld [vmem:[%s2] sm:$0x1]
  %v29 = vlaneseq
  %v30 = vshrl.u32 %v29, 7
  %v31 = vsub.s32 0, %v30
  %v32 = vrot.slane %v27, %v31
  %vm34 = vcmask 261120
  %v36 = vsel %vm34, %v20, 0
  %v39 = vsel %vm34, %v21, 0
  %v42 = vsel %vm34, %v22, 0
  %44 = vmatprep.subr.mxu0 0.0
  %45 = vmatpush1.msra.mxu0 %v23
  %46 = vmatprep.subr.mxu0 0.0
  %47 = vmatpush1.msra.mxu0 %v24
  %48 = vmatprep.subr.mxu0 0.0
  %49 = vmatpush1.msra.mxu0 %v25
  %50 = vmatprep.subr.mxu0 0.0
  %51 = vmatpush1.msra.mxu0 %v26
  %52 = vmatprep.subr.mxu0 0.0
  %53 = vmatpush1.msra.mxu0 0.0
  %54 = vmatprep.subr.mxu0 0.0
  %55 = vmatpush1.msra.mxu0 0.0
  %56 = vmatprep.subr.mxu0 0.0
  %57 = vmatpush1.msra.mxu0 0.0
  %58 = vmatprep.subr.mxu0 0.0
  %59 = vmatpush1.msra.mxu0 0.0
  %60 = vmatprep.subr.mxu0 0.0
  %61 = vmatpush1.msra.mxu0 0.0
  %62 = vmatprep.subr.mxu0 0.0
  %63 = vmatpush1.msra.mxu0 0.0
  %64 = vmatprep.subr.mxu0 0.0
  %65 = vmatpush1.msra.mxu0 0.0
  %66 = vmatprep.subr.mxu0 0.0
  %67 = vmatpush1.msra.mxu0 0.0
  %68 = vmatprep.subr.mxu0 0.0
  %69 = vmatpush1.msra.mxu0 0.0
  %70 = vmatprep.subr.mxu0 0.0
  %71 = vmatpush1.msra.mxu0 0.0
  %72 = vmatprep.subr.mxu0 0.0
  %73 = vmatpush1.msra.mxu0 0.0
  %74 = vmatprep.subr.mxu0 0.0
  %75 = vmatpush1.msra.mxu0 0.0
  %76 = vmatprep.subr.mxu0 0.0
  %77 = vmatpush1.msra.mxu0 0.0
  %78 = vmatprep.subr.mxu0 0.0
  %79 = vmatpush1.msra.mxu0 0.0
  %80 = vmatprep.subr.mxu0 0.0
  %81 = vmatpush1.msra.mxu0 0.0
  %82 = vmatprep.subr.mxu0 0.0
  %83 = vmatpush1.msra.mxu0 0.0
  %84 = vmatprep.subr.mxu0 0.0
  %85 = vmatpush1.msra.mxu0 0.0
  %86 = vmatprep.subr.mxu0 0.0
  %87 = vmatpush1.msra.mxu0 0.0
  %88 = vmatprep.subr.mxu0 0.0
  %89 = vmatpush1.msra.mxu0 0.0
  %90 = vmatprep.subr.mxu0 0.0
  %91 = vmatpush1.msra.mxu0 0.0
  %92 = vmatprep.subr.mxu0 0.0
  %93 = vmatpush1.msra.mxu0 0.0
  %94 = vmatprep.subr.mxu0 0.0
  %95 = vmatpush1.msra.mxu0 0.0
  %96 = vmatprep.subr.mxu0 0.0
  %97 = vmatpush1.msra.mxu0 0.0
  %98 = vmatprep.subr.mxu0 0.0
  %99 = vmatpush1.msra.mxu0 0.0
  %100 = vmatprep.subr.mxu0 0.0
  %101 = vmatpush1.msra.mxu0 0.0
  %102 = vmatprep.subr.mxu0 0.0
  %103 = vmatpush1.msra.mxu0 0.0
  %104 = vmatprep.subr.mxu0 0.0
  %105 = vmatpush1.msra.mxu0 0.0
  %106 = vmatprep.subr.mxu0 0.0
  %107 = vmatpush1.msra.mxu0 0.0
  %108 = vmatprep.mubr.f32.mxu0 0.0
  %109 = vmatmul.mubr.f32.gmra.mrb[0].mxu0 %v36
  %v110 = vpop.f32.mrb[0].mxu0
  %v111 = vadd.f32 %v32, %v110
  %v112 = vpop.f32.mrb[0].mxu0
  %113 = vmatprep.mubr.f32.mxu0 0.0
  %114 = vmatmul.mubr.f32.gmra.mrb[0].mxu0 %v39
  %v115 = vpop.f32.mrb[0].mxu0
  %v116 = vadd.f32 %v32, %v115
  %v117 = vpop.f32.mrb[0].mxu0
  %118 = vmatprep.mubr.f32.mxu0 0.0
  %119 = vmatmul.mubr.f32.gmra.mrb[0].mxu0 %v42
  %v120 = vpop.f32.mrb[0].mxu0
  %v121 = vadd.f32 %v32, %v120
  %v122 = vpop.f32.mrb[0].mxu0
  %123 = vdwg.mxu0
  %vm124 = vcmp.ge.f32.partialorder %v111, 0.0
  %vm125 = vcmp.ge.f32.partialorder %v116, 0.0
  %vm126 = vcmp.ge.f32.partialorder %v121, 0.0
  %v127 = vmul.f32 %v111, 0.2
  %v128 = vmul.f32 %v116, 0.2
  %v129 = vmul.f32 %v121, 0.2
  %v130 = vsel %vm124, %v111, %v127
  %v131 = vsel %vm125, %v116, %v128
  %v132 = vsel %vm126, %v121, %v129
  %v133 = vld [vmem:[%s3] sm:$0xff]
  %v134 = vld [vmem:[%s3 + $0x8] sm:$0xff]
  %v135 = vld [vmem:[%s4] sm:$0x1]
  %v137 = vlaneseq
  %v138 = vshrl.u32 %v137, 7
  %v139 = vsub.s32 0, %v138
  %v140 = vrot.slane %v135, %v139
  %vm142 = vcmask 130048
  %v144 = vsel %vm142, %v130, 0
  %v147 = vsel %vm142, %v131, 0
  %v150 = vsel %vm142, %v132, 0
  %152 = vmatprep.subr.mxu0 0.0
  %153 = vmatpush1.msra.mxu0 %v133
  %154 = vmatprep.subr.mxu0 0.0
  %155 = vmatpush1.msra.mxu0 %v134
  %156 = vmatprep.subr.mxu0 0.0
  %157 = vmatpush1.msra.mxu0 0.0
  %158 = vmatprep.subr.mxu0 0.0
  %159 = vmatpush1.msra.mxu0 0.0
  %160 = vmatprep.subr.mxu0 0.0
  %161 = vmatpush1.msra.mxu0 0.0
  %162 = vmatprep.subr.mxu0 0.0
  %163 = vmatpush1.msra.mxu0 0.0
  %164 = vmatprep.subr.mxu0 0.0
  %165 = vmatpush1.msra.mxu0 0.0
  %166 = vmatprep.subr.mxu0 0.0
  %167 = vmatpush1.msra.mxu0 0.0
  %168 = vmatprep.subr.mxu0 0.0
  %169 = vmatpush1.msra.mxu0 0.0
  %170 = vmatprep.subr.mxu0 0.0
  %171 = vmatpush1.msra.mxu0 0.0
  %172 = vmatprep.subr.mxu0 0.0
  %173 = vmatpush1.msra.mxu0 0.0
  %174 = vmatprep.subr.mxu0 0.0
  %175 = vmatpush1.msra.mxu0 0.0
  %176 = vmatprep.subr.mxu0 0.0
  %177 = vmatpush1.msra.mxu0 0.0
  %178 = vmatprep.subr.mxu0 0.0
  %179 = vmatpush1.msra.mxu0 0.0
  %180 = vmatprep.subr.mxu0 0.0
  %181 = vmatpush1.msra.mxu0 0.0
  %182 = vmatprep.subr.mxu0 0.0
  %183 = vmatpush1.msra.mxu0 0.0
  %184 = vmatprep.subr.mxu0 0.0
  %185 = vmatpush1.msra.mxu0 0.0
  %186 = vmatprep.subr.mxu0 0.0
  %187 = vmatpush1.msra.mxu0 0.0
  %188 = vmatprep.subr.mxu0 0.0
  %189 = vmatpush1.msra.mxu0 0.0
  %190 = vmatprep.subr.mxu0 0.0
  %191 = vmatpush1.msra.mxu0 0.0
  %192 = vmatprep.subr.mxu0 0.0
  %193 = vmatpush1.msra.mxu0 0.0
  %194 = vmatprep.subr.mxu0 0.0
  %195 = vmatpush1.msra.mxu0 0.0
  %196 = vmatprep.subr.mxu0 0.0
  %197 = vmatpush1.msra.mxu0 0.0
  %198 = vmatprep.subr.mxu0 0.0
  %199 = vmatpush1.msra.mxu0 0.0
  %200 = vmatprep.subr.mxu0 0.0
  %201 = vmatpush1.msra.mxu0 0.0
  %202 = vmatprep.subr.mxu0 0.0
  %203 = vmatpush1.msra.mxu0 0.0
  %204 = vmatprep.subr.mxu0 0.0
  %205 = vmatpush1.msra.mxu0 0.0
  %206 = vmatprep.subr.mxu0 0.0
  %207 = vmatpush1.msra.mxu0 0.0
  %208 = vmatprep.subr.mxu0 0.0
  %209 = vmatpush1.msra.mxu0 0.0
  %210 = vmatprep.subr.mxu0 0.0
  %211 = vmatpush1.msra.mxu0 0.0
  %212 = vmatprep.subr.mxu0 0.0
  %213 = vmatpush1.msra.mxu0 0.0
  %214 = vmatprep.subr.mxu0 0.0
  %215 = vmatpush1.msra.mxu0 0.0
  %216 = vmatprep.mubr.f32.mxu0 0.0
  %217 = vmatmul.mubr.f32.gmra.mrb[0].mxu0 %v144
  %v218 = vpop.f32.mrb[0].mxu0
  %v219 = vadd.f32 %v140, %v218
  %v220 = vpop.f32.mrb[0].mxu0
  %221 = vmatprep.mubr.f32.mxu0 0.0
  %222 = vmatmul.mubr.f32.gmra.mrb[0].mxu0 %v147
  %v223 = vpop.f32.mrb[0].mxu0
  %v224 = vadd.f32 %v140, %v223
  %v225 = vpop.f32.mrb[0].mxu0
  %226 = vmatprep.mubr.f32.mxu0 0.0
  %227 = vmatmul.mubr.f32.gmra.mrb[0].mxu0 %v150
  %v228 = vpop.f32.mrb[0].mxu0
  %v229 = vadd.f32 %v140, %v228
  %v230 = vpop.f32.mrb[0].mxu0
  %231 = vdwg.mxu0
  %232 = vst [vmem:[%s5] sm:$0xff] %v219
  %233 = vst [vmem:[%s5 + $0x8] sm:$0xff] %v224
  %234 = vst [vmem:[%s5 + $0x10] sm:$0xff] %v229
  // Predicated region
  $region22: #{trans_output.1} parent=0 // pred_check
    _
  $region23: #{trans_output.1} parent=0 // pred_check_branch
    %236 = sbr.rel (0) target = $region25
  $region24: #{trans_output.1} parent=0 // pred_region
    _
  $region25: #{trans_output.1} parent=0 // pred_fallthru
    _
  // Predicated region
  $region26: #{trans_output.1} parent=0 // pred_check
    _
  $region27: #{trans_output.1} parent=0 // pred_check_branch
    %238 = sbr.rel (0) target = $region29
  $region28: #{trans_output.1} parent=0 // pred_region
    _
  $region29: #{trans_output.1} parent=0 // pred_fallthru
    _

</llo_original>
